<compile_context>
chip_gen: v6e
topology: v6e:2x2x1
jax: 0.10.0
libtpu: 0.0.40
codegen_flags: <defaults>
</compile_context>

<pallas_src>
import jax
import jax.numpy as jnp
from jax.experimental import pallas as pl
from jax.experimental.pallas import tpu as pltpu

# Scaled-down analogue of the reference constant `patch_size = 40`.
PATCH_SIZE = 8


def _generate_image_kernel(img_ref, patch_ref, mask_ref, out_ref):
    """One (batch-tile, strip) step.

    img_ref / out_ref : (bt, C, ps, W)  -- one ps-tall row strip (top or bottom)
    patch_ref         : (2, C, ps, ps)  -- (left, right) patches for this strip
    mask_ref          : (1, ps, ps)
    """
    ps = mask_ref.shape[-1]
    W = img_ref.shape[-1]

    # Threshold once, reuse for both corners of the strip.
    cond = (mask_ref[0] > 1e-5)[None, None, :, :]          # (1, 1, ps, ps)

    # Lane-dense full-width copy of the strip (interior columns unchanged).
    out_ref[...] = img_ref[...]

    # Left corner (applied first, like the PyTorch loop).
    out_ref[:, :, :, :ps] = jnp.where(
        cond, patch_ref[0][None], img_ref[:, :, :, :ps]).astype(out_ref.dtype)

    # Right corner (applied second).  If the two corners overlap in W, the
    # second select must see the first one's result (sequential torch.where).
    right_src = out_ref if 2 * ps > W else img_ref
    out_ref[:, :, :, W - ps:] = jnp.where(
        cond, patch_ref[1][None],
        right_src[:, :, :, W - ps:]).astype(out_ref.dtype)


def _pick_batch_tile(batch, bytes_per_batch, budget=2 * 1024 * 1024):
    """Largest divisor of `batch` whose strip block stays under `budget`."""
    bt = 1
    for d in range(1, batch + 1):
        if batch % d == 0 and d * bytes_per_batch <= budget:
            bt = d
    return bt


def generate_image(img, patch, mask):
    """Pallas wrapper. img:(B,C,H,W) patch:(4,C,ps,ps) mask:(1,ps,ps)."""
    B, C, H, W = img.shape
    ps = mask.shape[-1]
    assert patch.shape == (4, C, ps, ps), patch.shape
    assert mask.shape == (1, ps, ps), mask.shape
    # Constraints of the strip-tiled kernel (hold for the shapes used here).
    assert ps % 8 == 0, "patch edge must be a multiple of 8 (sublane tiling)"
    assert H % ps == 0 and H >= 2 * ps, "H must be a multiple of ps and >= 2*ps"
    assert W >= ps
    # TODO(synk): support H not divisible by ps via pl.Element offsets on H.

    itemsize = jnp.dtype(img.dtype).itemsize
    bt = _pick_batch_tile(B, C * ps * W * itemsize)
    strip_block = H // ps - 1          # H block index of the bottom strip
    grid = (B // bt, 2)                # (batch tiles, top/bottom strip)

    img_spec = pl.BlockSpec((bt, C, ps, W),
                            lambda b, s: (b, 0, s * strip_block, 0))

    # HBM traffic is only the two corner strips in+out, plus patches and mask;
    # flops are the corner compares/selects.
    strip_bytes = 2 * B * C * (2 * ps) * W * itemsize
    cost = pl.CostEstimate(
        flops=2 * 4 * B * C * ps * ps,
        transcendentals=0,
        bytes_accessed=(strip_bytes
                        + patch.size * jnp.dtype(patch.dtype).itemsize
                        + mask.size * jnp.dtype(mask.dtype).itemsize),
    )

    return pl.pallas_call(
        _generate_image_kernel,
        out_shape=jax.ShapeDtypeStruct((B, C, H, W), img.dtype),
        grid=grid,
        in_specs=[
            img_spec,                                                 # image strip
            pl.BlockSpec((2, C, ps, ps), lambda b, s: (s, 0, 0, 0)),  # strip patches
            pl.BlockSpec((1, ps, ps), lambda b, s: (0, 0, 0)),        # mask
        ],
        out_specs=img_spec,
        # Output is the (donated) input buffer: rows outside the two corner
        # strips are never read or written by the kernel.
        input_output_aliases={0: 0},
        compiler_params=pltpu.CompilerParams(
            dimension_semantics=("parallel", "parallel")),
        cost_estimate=cost,
    )(img, patch, mask)


def generate_image_ref(img, patch, mask):
    """Pure-JAX reference mirroring the PyTorch forward pass exactly."""
    B, C, H, W = img.shape
    ps = mask.shape[-1]
    pad_way = (
        (0, W - ps, 0, H - ps),   # top-left
        (W - ps, 0, 0, H - ps),   # top-right
        (0, W - ps, H - ps, 0),   # bottom-left
        (W - ps, 0, H - ps, 0),   # bottom-right
    )
    out = img
    for idx, (l, r, t, b) in enumerate(pad_way):
        m = jnp.pad(mask, ((0, 0), (t, b), (l, r))).astype(jnp.float32)  # (1,H,W)
        p = jnp.pad(patch[idx], ((0, 0), (t, b), (l, r)))                # (C,H,W)
        out = jnp.where(m[None] > 1e-5, p[None], out)
    return out


if __name__ == "__main__":
    key = jax.random.PRNGKey(0)
    k_img, k_patch, k_mask = jax.random.split(key, 3)

    B, C, H, W = 2, 4, 16, 16
    ps = PATCH_SIZE

    img = jax.random.normal(k_img, (B, C, H, W), dtype=jnp.float32)
    patch = jax.random.normal(k_patch, (4, C, ps, ps), dtype=jnp.float32)
    # Binary-ish mask, exercised through the `> 1e-5` threshold.
    mask = (jax.random.uniform(k_mask, (1, ps, ps)) > 0.5).astype(jnp.float32)

    # Compute the reference first: the Pallas call donates `img`
    # (in-place corner update on the aliased buffer).
    ref = jax.block_until_ready(generate_image_ref(img, patch, mask))

    run = jax.jit(generate_image, donate_argnums=(0,))
    out = jax.block_until_ready(run(img, patch, mask))

    assert out.shape == (B, C, H, W)
    assert jnp.allclose(out, ref, atol=1e-6), "Pallas output mismatch vs reference"

    print("KERNEL_OK")
</pallas_src>

<mosaic_0001>
module attributes {stable_mosaic.version = 11 : i64} {
  func.func @_generate_image_kernel(%arg0: i32, %arg1: i32, %arg2: memref<2x4x8x16xf32, #tpu.memory_space<vmem>>, %arg3: memref<2x4x8x8xf32, #tpu.memory_space<vmem>>, %arg4: memref<1x8x8xf32, #tpu.memory_space<vmem>>, %arg5: memref<2x4x8x16xf32, #tpu.memory_space<vmem>>) attributes {dimension_semantics = [#tpu.dimension_semantics<parallel>, #tpu.dimension_semantics<parallel>], iteration_bounds = array<i64: 1, 2>, scalar_prefetch = 0 : i64, scratch_operands = 0 : i64, tpu.core_type = #tpu.core_type<tc>, window_params = [{transform_indices = @transform_0, window_bounds = array<i64: 2, 4, 8, 16>}, {transform_indices = @transform_1, window_bounds = array<i64: 2, 4, 8, 8>}, {pipeline_mode = #tpu.pipeline_mode<synchronous>, transform_indices = @transform_2, window_bounds = array<i64: 1, 8, 8>}, {transform_indices = @transform_3, window_bounds = array<i64: 2, 4, 8, 16>}]} {
    %c0 = arith.constant 0 : index
    %c0_0 = arith.constant 0 : index
    %c0_1 = arith.constant 0 : index
    %0 = vector.load %arg4[%c0, %c0_0, %c0_1] : memref<1x8x8xf32, #tpu.memory_space<vmem>>, vector<1x8x8xf32>
    %1 = vector.shape_cast %0 : vector<1x8x8xf32> to vector<8x8xf32>
    %cst = arith.constant 9.99999974E-6 : f32
    %2 = vector.broadcast %cst : f32 to vector<8x8xf32>
    %3 = arith.cmpf ogt, %1, %2 : vector<8x8xf32>
    %4 = vector.shape_cast %3 : vector<8x8xi1> to vector<1x1x8x8xi1>
    %c0_2 = arith.constant 0 : index
    %c0_3 = arith.constant 0 : index
    %c0_4 = arith.constant 0 : index
    %c0_5 = arith.constant 0 : index
    %5 = vector.load %arg2[%c0_2, %c0_3, %c0_4, %c0_5] : memref<2x4x8x16xf32, #tpu.memory_space<vmem>>, vector<2x4x8x16xf32>
    %c0_6 = arith.constant 0 : index
    %c0_7 = arith.constant 0 : index
    %c0_8 = arith.constant 0 : index
    %c0_9 = arith.constant 0 : index
    %6 = vector.load %arg5[%c0_6, %c0_7, %c0_8, %c0_9] : memref<2x4x8x16xf32, #tpu.memory_space<vmem>>, vector<2x4x8x16xf32>
    tpu.vector_store %arg5[%c0_6, %c0_7, %c0_8, %c0_9], %5 {strides = array<i32>} : memref<2x4x8x16xf32, #tpu.memory_space<vmem>>, vector<2x4x8x16xf32>,
    %c0_10 = arith.constant 0 : index
    %c0_11 = arith.constant 0 : index
    %c0_12 = arith.constant 0 : index
    %c0_13 = arith.constant 0 : index
    %7 = vector.load %arg3[%c0_10, %c0_11, %c0_12, %c0_13] : memref<2x4x8x8xf32, #tpu.memory_space<vmem>>, vector<1x4x8x8xf32>
    %8 = vector.shape_cast %7 : vector<1x4x8x8xf32> to vector<4x8x8xf32>
    %9 = vector.shape_cast %8 : vector<4x8x8xf32> to vector<1x4x8x8xf32>
    %c0_14 = arith.constant 0 : index
    %c0_15 = arith.constant 0 : index
    %c0_16 = arith.constant 0 : index
    %c0_17 = arith.constant 0 : index
    %10 = vector.load %arg2[%c0_14, %c0_15, %c0_16, %c0_17] : memref<2x4x8x16xf32, #tpu.memory_space<vmem>>, vector<2x4x8x8xf32>
    %11 = vector.shape_cast %4 : vector<1x1x8x8xi1> to vector<1x1x8x8xi1>
    %12 = vector.broadcast %11 : vector<1x1x8x8xi1> to vector<2x4x8x8xi1>
    %13 = vector.shape_cast %9 : vector<1x4x8x8xf32> to vector<1x4x8x8xf32>
    %14 = vector.broadcast %13 : vector<1x4x8x8xf32> to vector<2x4x8x8xf32>
    %15 = arith.select %12, %14, %10 : vector<2x4x8x8xi1>, vector<2x4x8x8xf32>
    %c0_18 = arith.constant 0 : index
    %c0_19 = arith.constant 0 : index
    %c0_20 = arith.constant 0 : index
    %c0_21 = arith.constant 0 : index
    %16 = vector.load %arg5[%c0_18, %c0_19, %c0_20, %c0_21] : memref<2x4x8x16xf32, #tpu.memory_space<vmem>>, vector<2x4x8x8xf32>
    tpu.vector_store %arg5[%c0_18, %c0_19, %c0_20, %c0_21], %15 {strides = array<i32>} : memref<2x4x8x16xf32, #tpu.memory_space<vmem>>, vector<2x4x8x8xf32>,
    %c1 = arith.constant 1 : index
    %c0_22 = arith.constant 0 : index
    %c0_23 = arith.constant 0 : index
    %c0_24 = arith.constant 0 : index
    %17 = vector.load %arg3[%c1, %c0_22, %c0_23, %c0_24] : memref<2x4x8x8xf32, #tpu.memory_space<vmem>>, vector<1x4x8x8xf32>
    %18 = vector.shape_cast %17 : vector<1x4x8x8xf32> to vector<4x8x8xf32>
    %19 = vector.shape_cast %18 : vector<4x8x8xf32> to vector<1x4x8x8xf32>
    %c0_25 = arith.constant 0 : index
    %c0_26 = arith.constant 0 : index
    %c0_27 = arith.constant 0 : index
    %c8 = arith.constant 8 : index
    %20 = vector.load %arg2[%c0_25, %c0_26, %c0_27, %c8] : memref<2x4x8x16xf32, #tpu.memory_space<vmem>>, vector<2x4x8x8xf32>
    %21 = vector.shape_cast %4 : vector<1x1x8x8xi1> to vector<1x1x8x8xi1>
    %22 = vector.broadcast %21 : vector<1x1x8x8xi1> to vector<2x4x8x8xi1>
    %23 = vector.shape_cast %19 : vector<1x4x8x8xf32> to vector<1x4x8x8xf32>
    %24 = vector.broadcast %23 : vector<1x4x8x8xf32> to vector<2x4x8x8xf32>
    %25 = arith.select %22, %24, %20 : vector<2x4x8x8xi1>, vector<2x4x8x8xf32>
    %c0_28 = arith.constant 0 : index
    %c0_29 = arith.constant 0 : index
    %c0_30 = arith.constant 0 : index
    %c8_31 = arith.constant 8 : index
    %26 = vector.load %arg5[%c0_28, %c0_29, %c0_30, %c8_31] : memref<2x4x8x16xf32, #tpu.memory_space<vmem>>, vector<2x4x8x8xf32>
    tpu.vector_store %arg5[%c0_28, %c0_29, %c0_30, %c8_31], %25 {strides = array<i32>} : memref<2x4x8x16xf32, #tpu.memory_space<vmem>>, vector<2x4x8x8xf32>,
    return
  }
  func.func @transform_0(%arg0: i32, %arg1: i32) -> (i32, i32, i32, i32) {
    %c1_i32 = arith.constant 1 : i32
    %0 = arith.muli %arg1, %c1_i32 : i32
    %c0_i32 = arith.constant 0 : i32
    %c0_i32_0 = arith.constant 0 : i32
    %c0_i32_1 = arith.constant 0 : i32
    return %arg0, %c0_i32, %0, %c0_i32_0 : i32, i32, i32, i32
  }
  func.func @transform_1(%arg0: i32, %arg1: i32) -> (i32, i32, i32, i32) {
    %c0_i32 = arith.constant 0 : i32
    %c0_i32_0 = arith.constant 0 : i32
    %c0_i32_1 = arith.constant 0 : i32
    %c0_i32_2 = arith.constant 0 : i32
    return %arg1, %c0_i32, %c0_i32_0, %c0_i32_1 : i32, i32, i32, i32
  }
  func.func @transform_2(%arg0: i32, %arg1: i32) -> (i32, i32, i32) {
    %c0_i32 = arith.constant 0 : i32
    %c0_i32_0 = arith.constant 0 : i32
    %c0_i32_1 = arith.constant 0 : i32
    %c0_i32_2 = arith.constant 0 : i32
    return %c0_i32, %c0_i32_0, %c0_i32_1 : i32, i32, i32
  }
  func.func @transform_3(%arg0: i32, %arg1: i32) -> (i32, i32, i32, i32) {
    %c1_i32 = arith.constant 1 : i32
    %0 = arith.muli %arg1, %c1_i32 : i32
    %c0_i32 = arith.constant 0 : i32
    %c0_i32_0 = arith.constant 0 : i32
    %c0_i32_1 = arith.constant 0 : i32
    return %arg0, %c0_i32, %0, %c0_i32_0 : i32, i32, i32, i32
  }
}

</mosaic_0001>

<llo_original>
// kernel: generate_image.1
$region0: #{generate_image.1}
  #allocation0 [shape = 'u32[]', space=smem, size = 0x4, offset = 0x4, fixed_abs, tag = 'smem constant byte address 0x4 - core index']
  #allocation1 [shape = 'u32[144,128]{1,0:T(1,128)}', space=vmem, size = 0x12000, scoped, tag = 'internal scratch']
  %s0 = inlined_call_operand.hbm [shape: f32[2,4,16,16], index: 0, kind: input, shape index: {}, may-alias: {0,3}]
  %s1 = inlined_call_operand.hbm [shape: f32[4,4,8,8], index: 1, kind: input, shape index: {}]
  %s2 = inlined_call_operand.hbm [shape: f32[1,8,8], index: 2, kind: input, shape index: {}]
  %s3 = inlined_call_operand.hbm [shape: f32[2,4,16,16], index: 3, kind: output, shape index: {}, may-alias: {0,3}]
  %s4 = sld [smem:[#allocation0]]
  $region57: #{generate_image.1} parent=0
    _
  %s6 = ssub.s32 1, %s4
  %s7 = scalar_select 0, %s6, %s4
  $region1: #{generate_image.1} parent=0
    #allocation2 [shape = 'u8[65536]{0}', space=vmem, size = 0x10000, scoped, tag = 'input window, operand 0']
    #allocation3 [shape = 's32[2]{0}', space=sflag, size = 0x8, scoped, tag = 'scoped memory for generate_image.1']
    #allocation4 [shape = 's32[2]{0}', space=sflag, size = 0x8, scoped, tag = 'scoped memory for generate_image.1']
    #allocation5 [shape = 'u8[65536]{0}', space=vmem, size = 0x10000, scoped, tag = 'input window, operand 1']
    #allocation6 [shape = 's32[2]{0}', space=sflag, size = 0x8, scoped, tag = 'scoped memory for generate_image.1']
    #allocation7 [shape = 'u8[4096]{0}', space=vmem, size = 0x1000, scoped, tag = 'input window, operand 2, single buffered']
    #allocation8 [shape = 'u8[65536]{0}', space=vmem, size = 0x10000, scoped, tag = 'output window, operand 0']
    %8 = vsyncpa [#allocation3], 0
    %s9 = scalar_lea.sflag [#allocation3], 1
    %10 = vsyncpa %s9, 0
    %11 = vsyncpa [#allocation6], 0
    %s12 = scalar_lea.sflag [#allocation6], 1
    %13 = vsyncpa %s12, 0
    %14 = vsyncpa [#allocation4], 0
    %s15 = scalar_lea.sflag [#allocation4], 1
    %16 = vsyncpa %s15, 0
    loop: start=0, step=1, limit=4
    $region2: #{generate_image.1} parent=1 // loop_pre_header
      _
    $region3: #{generate_image.1} parent=1 // loop_header
      %s18 = sphi 0, %s22
      %p19 = scmp.ge.s32.totalorder %s18, 4
      %s25 = sphi 0, %s37
      %s26 = sphi 0, %s33
      %s27 = sphi 0, %s25
      %s28 = sphi 0, %s26
      %s29 = sphi 0, %s27
      %s30 = sphi 0, %s28
      %s42 = sphi 0, %s44
      %s45 = sphi 0, %s42
      %s46 = sphi 0, %s45
      %s62 = sphi 0, %s46
      %s68 = sphi 0, %s70
      %s71 = sphi 0, %s68
      %s72 = sphi 0, %s71
      %s88 = sphi 0, %s72
      %s92 = sphi 0, %s92
      %s94 = sphi 0, %s92
      %s95 = sphi 0, %s94
      %s109 = sphi 0, %s95
      %s117 = sphi 0, %s119
      %s120 = sphi 0, %s117
      %s121 = sphi 0, %s120
      %s137 = sphi 0, %s121
    $region4: #{generate_image.1} parent=1 // loop_header_branch
      %21 = sbr.rel (%p19) target = $region8
    $region5: #{generate_image.1} parent=1 // loop_body
      %s23 = ssub.s32 %s18, 1
      %s24 = ssub.s32 %s18, 2
      %s31 = sadd.s32 1, %s26
      %p32 = scmp.ge.s32.totalorder %s31, 2
      %s33 = scalar_select %p32, 0, %s31
      %s34 = sadd.s32 1, %s25
      %s35 = scalar_select %p32, %s34, %s25
      %p36 = scmp.ge.s32.totalorder %s35, 1
      %s37 = scalar_select %p36, 0, %s35
      %s38 = ssub.s32 %s25, %s37
      %s39 = ssub.s32 %s26, %s33
      %s40 = sor.u32 %s38, %s39
      %p41 = scmp.eq.s32.totalorder %s40, 0
      %s43 = sadd.s32 %s42, 1
      %s44 = scalar_select %p41, %s42, %s43
      %p47 = pneg %p41
      %p48 = scmp.eq.s32.totalorder %s18, 1
      %p49 = por %p47, %p48
      %p50 = scmp.ne.s32.totalorder %s42, %s45
      %p51 = scmp.eq.s32.totalorder %s18, 0
      %p52 = por %p50, %p51
      %p53 = scmp.ne.s32.totalorder %s42, %s45
      %p54 = scmp.eq.s32.totalorder %s23, 1
      %p55 = por %p53, %p54
      %p56 = scmp.ne.s32.totalorder %s45, %s46
      %p57 = scmp.eq.s32.totalorder %s23, 0
      %p58 = por %p56, %p57
      %p59 = scmp.ne.s32.totalorder %s45, %s46
      %p60 = scmp.eq.s32.totalorder %s24, 1
      %p61 = por %p59, %p60
      %p63 = scmp.ne.s32.totalorder %s46, %s62
      %p64 = scmp.eq.s32.totalorder %s24, 0
      %p65 = por %p63, %p64
      %s66 = ssub.s32 %s26, %s33
      %p67 = scmp.eq.s32.totalorder %s66, 0
      %s69 = sadd.s32 %s68, 1
      %s70 = scalar_select %p67, %s68, %s69
      %p73 = pneg %p67
      %p74 = scmp.eq.s32.totalorder %s18, 1
      %p75 = por %p73, %p74
      %p76 = scmp.ne.s32.totalorder %s68, %s71
      %p77 = scmp.eq.s32.totalorder %s18, 0
      %p78 = por %p76, %p77
      %p79 = scmp.ne.s32.totalorder %s68, %s71
      %p80 = scmp.eq.s32.totalorder %s23, 1
      %p81 = por %p79, %p80
      %p82 = scmp.ne.s32.totalorder %s71, %s72
      %p83 = scmp.eq.s32.totalorder %s23, 0
      %p84 = por %p82, %p83
      %p85 = scmp.ne.s32.totalorder %s71, %s72
      %p86 = scmp.eq.s32.totalorder %s24, 1
      %p87 = por %p85, %p86
      %p89 = scmp.ne.s32.totalorder %s72, %s88
      %p90 = scmp.eq.s32.totalorder %s24, 0
      %p91 = por %p89, %p90
      %s93 = sadd.s32 %s92, 1
      %p96 = scmp.eq.s32.totalorder %s18, 1
      %p97 = scmp.ne.s32.totalorder %s92, %s94
      %p98 = scmp.eq.s32.totalorder %s18, 0
      %p99 = por %p97, %p98
      %p100 = scmp.ne.s32.totalorder %s92, %s94
      %p101 = scmp.eq.s32.totalorder %s23, 1
      %p102 = por %p100, %p101
      %p103 = scmp.ne.s32.totalorder %s94, %s95
      %p104 = scmp.eq.s32.totalorder %s23, 0
      %p105 = por %p103, %p104
      %p106 = scmp.ne.s32.totalorder %s94, %s95
      %p107 = scmp.eq.s32.totalorder %s24, 1
      %p108 = por %p106, %p107
      %p110 = scmp.ne.s32.totalorder %s95, %s109
      %p111 = scmp.eq.s32.totalorder %s24, 0
      %p112 = por %p110, %p111
      %s113 = ssub.s32 %s25, %s37
      %s114 = ssub.s32 %s26, %s33
      %s115 = sor.u32 %s113, %s114
      %p116 = scmp.eq.s32.totalorder %s115, 0
      %s118 = sadd.s32 %s117, 1
      %s119 = scalar_select %p116, %s117, %s118
      %p122 = pneg %p116
      %p123 = scmp.eq.s32.totalorder %s18, 1
      %p124 = por %p122, %p123
      %p125 = scmp.ne.s32.totalorder %s117, %s120
      %p126 = scmp.eq.s32.totalorder %s18, 0
      %p127 = por %p125, %p126
      %p128 = scmp.ne.s32.totalorder %s117, %s120
      %p129 = scmp.eq.s32.totalorder %s23, 1
      %p130 = por %p128, %p129
      %p131 = scmp.ne.s32.totalorder %s120, %s121
      %p132 = scmp.eq.s32.totalorder %s23, 0
      %p133 = por %p131, %p132
      %p134 = scmp.ne.s32.totalorder %s120, %s121
      %p135 = scmp.eq.s32.totalorder %s24, 1
      %p136 = por %p134, %p135
      %p138 = scmp.ne.s32.totalorder %s121, %s137
      %p139 = scmp.eq.s32.totalorder %s24, 0
      %p140 = por %p138, %p139
      %p141 = scmp.le.s32.totalorder 1, %s18
      %p142 = scmp.lt.s32.totalorder %s18, 3
      %p143 = pnand %p141, %p142
      %p144 = pneg %p143
      // Predicated region
      $region9: #{generate_image.1} parent=5 // pred_check
        _
      $region10: #{generate_image.1} parent=5 // pred_check_branch
        %146 = sbr.rel (%p143) target = $region12
      $region11: #{generate_image.1} parent=5 // pred_region
        %s147 = ssub.s32 %s18, 1
        // Predicated region
        $region13: #{generate_image.1} parent=11 // pred_check
          %p148 = pneg %p105
        $region14: #{generate_image.1} parent=11 // pred_check_branch
          %150 = sbr.rel (%p148) target = $region16
        $region15: #{generate_image.1} parent=11 // pred_region
          %s152 = ssub.s32 128, 128
          %153 = vsyncadd [#allocation6], %s152
          %s155 = sshll.u32 [#allocation7], 4
          %s156 = int_to_ptr.vmem [resolvable:$true] %s155
          %158 = dma.hbm_to_vmem [thread:$0]  %s2, 128, %s156, [#allocation6]
        $region16: #{generate_image.1} parent=11 // pred_fallthru
          _
      $region12: #{generate_image.1} parent=5 // pred_fallthru
        _
      %p159 = scmp.lt.s32.totalorder %s18, 2
      // Predicated region
      $region17: #{generate_image.1} parent=5 // pred_check
        %p160 = pneg %p159
      $region18: #{generate_image.1} parent=5 // pred_check_branch
        %162 = sbr.rel (%p160) target = $region20
      $region19: #{generate_image.1} parent=5 // pred_region
        // Predicated region
        $region21: #{generate_image.1} parent=19 // pred_check
          %p163 = pneg %p52
        $region22: #{generate_image.1} parent=19 // pred_check_branch
          %165 = sbr.rel (%p163) target = $region24
        $region23: #{generate_image.1} parent=19 // pred_region
          %s166 = sand.u32 %s42, 1
          %s167 = scalar_lea.sflag [#allocation3], %s166
          %s168 = sand.u32 %s42, 1
          %s169 = smul.addr %s168, 64
          %s170 = scalar_lea.vmem [#allocation2], %s169
          %s171 = smul.u32 2, %s25
          %s173 = ssub.s32 1024, 1024
          %174 = vsyncadd %s167, %s173
          %s175 = smul.addr %s171, 8
          %s176 = sadd.s32 %s26, %s175
          %s177 = smul.addr %s176, 128
          %s178 = scalar_lea.hbm %s0, %s177
          %s179 = sshll.u32 %s170, 4
          %s180 = int_to_ptr.vmem [resolvable:$true] %s179
          %185 = dma.hbm_to_vmem [thread:$0]  %s178, 1024, %s180, %s167, 256, 128, 8
        $region24: #{generate_image.1} parent=19 // pred_fallthru
          _
        // Predicated region
        $region25: #{generate_image.1} parent=19 // pred_check
          %p186 = pneg %p78
        $region26: #{generate_image.1} parent=19 // pred_check_branch
          %188 = sbr.rel (%p186) target = $region28
        $region27: #{generate_image.1} parent=19 // pred_region
          %s189 = sand.u32 %s18, 1
          %s190 = scalar_lea.sflag [#allocation6], %s189
          %s191 = sand.u32 %s68, 1
          %s192 = smul.addr %s191, 64
          %s193 = scalar_lea.vmem [#allocation5], %s192
          %s194 = smul.u32 2, %s26
          %s196 = ssub.s32 1024, 1024
          %197 = vsyncadd %s190, %s196
          %s198 = smul.addr %s194, 4
          %s199 = smul.addr %s198, 128
          %s200 = scalar_lea.hbm %s1, %s199
          %s201 = sshll.u32 %s193, 4
          %s202 = int_to_ptr.vmem [resolvable:$true] %s201
          %207 = dma.hbm_to_vmem [thread:$0]  %s200, 1024, %s202, %s190, 128, 128, 8
        $region28: #{generate_image.1} parent=19 // pred_fallthru
          _
      $region20: #{generate_image.1} parent=5 // pred_fallthru
        _
      %p208 = scmp.le.s32.totalorder 1, %s18
      %p209 = scmp.lt.s32.totalorder %s18, 3
      %p210 = pnand %p208, %p209
      %p211 = pneg %p210
      // Predicated region
      $region29: #{generate_image.1} parent=5 // pred_check
        _
      $region30: #{generate_image.1} parent=5 // pred_check_branch
        %213 = sbr.rel (%p210) target = $region32
      $region31: #{generate_image.1} parent=5 // pred_region
        %s214 = ssub.s32 %s18, 1
        %s215 = sand.u32 %s45, 1
        %s216 = scalar_lea.sflag [#allocation3], %s215
        %s217 = sand.u32 %s45, 1
        %s218 = smul.addr %s217, 64
        %s219 = scalar_lea.vmem [#allocation2], %s218
        // Predicated region
        $region33: #{generate_image.1} parent=31 // pred_check
          %p220 = pneg %p58
        $region34: #{generate_image.1} parent=31 // pred_check_branch
          %222 = sbr.rel (%p220) target = $region36
        $region35: #{generate_image.1} parent=31 // pred_region
          %223 = dma.done %s216, 1024
        $region36: #{generate_image.1} parent=31 // pred_fallthru
          _
        %s224 = sand.u32 %s23, 1
        %s225 = scalar_lea.sflag [#allocation6], %s224
        %s226 = sand.u32 %s71, 1
        %s227 = smul.addr %s226, 64
        %s228 = scalar_lea.vmem [#allocation5], %s227
        // Predicated region
        $region37: #{generate_image.1} parent=31 // pred_check
          %p229 = pneg %p84
        $region38: #{generate_image.1} parent=31 // pred_check_branch
          %231 = sbr.rel (%p229) target = $region40
        $region39: #{generate_image.1} parent=31 // pred_region
          %232 = dma.done %s225, 1024
        $region40: #{generate_image.1} parent=31 // pred_fallthru
          _
        // Predicated region
        $region41: #{generate_image.1} parent=31 // pred_check
          %p233 = pneg %p105
        $region42: #{generate_image.1} parent=31 // pred_check_branch
          %235 = sbr.rel (%p233) target = $region44
        $region43: #{generate_image.1} parent=31 // pred_region
          %236 = dma.done [#allocation6], 128
        $region44: #{generate_image.1} parent=31 // pred_fallthru
          _
        %s237 = sand.u32 %s45, 1
        %s238 = scalar_lea.sflag [#allocation3], %s237
        %s239 = sand.u32 %s45, 1
        %s240 = smul.addr %s239, 64
        %s241 = scalar_lea.vmem [#allocation2], %s240
        %p242 = pneg %p58
        %p243 = pneg %p55
        %s244 = sand.u32 %s23, 1
        %s245 = scalar_lea.sflag [#allocation6], %s244
        %s246 = sand.u32 %s71, 1
        %s247 = smul.addr %s246, 64
        %s248 = scalar_lea.vmem [#allocation5], %s247
        %p249 = pneg %p84
        %p250 = pneg %p81
        %p251 = pneg %p105
        %p252 = pneg %p102
        %p253 = pneg %p133
        %p254 = pneg %p130
        %s255 = sand.u32 %s120, 1
        %s256 = scalar_lea.sflag [#allocation4], %s255
        %s257 = sand.u32 %s120, 1
        %s258 = smul.addr %s257, 64
        %s259 = scalar_lea.vmem [#allocation8], %s258
        %s260 = smul.u32 2, %s27
        %s261 = smul.u32 2, %s28
        %s262 = smul.u32 2, %s27
        %v263 = vld [vmem:[#allocation7] sm:$0xff]
        %vm264 = vcmp.gt.f32.partialorder %v263, 1e-05
        %v265 = vld [vmem:[%s219] sm:$0xff]
        %v266 = vld [vmem:[%s219 + $0x8] sm:$0xff]
        %v267 = vld [vmem:[%s219 + $0x10] sm:$0xff]
        %v268 = vld [vmem:[%s219 + $0x18] sm:$0xff]
        %v269 = vld [vmem:[%s219 + $0x20] sm:$0xff]
        %v270 = vld [vmem:[%s219 + $0x28] sm:$0xff]
        %v271 = vld [vmem:[%s219 + $0x30] sm:$0xff]
        %v272 = vld [vmem:[%s219 + $0x38] sm:$0xff]
        %vm273 = vcmask 130048
        %274 = vst.msk [vmem:[%s259] sm:$0xff] %vm273, %v265
        %275 = vst.msk [vmem:[%s259 + $0x8] sm:$0xff] %vm273, %v266
        %276 = vst.msk [vmem:[%s259 + $0x10] sm:$0xff] %vm273, %v267
        %277 = vst.msk [vmem:[%s259 + $0x18] sm:$0xff] %vm273, %v268
        %278 = vst.msk [vmem:[%s259 + $0x20] sm:$0xff] %vm273, %v269
        %279 = vst.msk [vmem:[%s259 + $0x28] sm:$0xff] %vm273, %v270
        %280 = vst.msk [vmem:[%s259 + $0x30] sm:$0xff] %vm273, %v271
        %281 = vst.msk [vmem:[%s259 + $0x38] sm:$0xff] %vm273, %v272
        %v282 = vld [vmem:[%s228] sm:$0xff]
        %v283 = vld [vmem:[%s228 + $0x8] sm:$0xff]
        %v284 = vld [vmem:[%s228 + $0x10] sm:$0xff]
        %v285 = vld [vmem:[%s228 + $0x18] sm:$0xff]
        %v286 = vld [vmem:[%s219] sm:$0xff]
        %v287 = vld [vmem:[%s219 + $0x8] sm:$0xff]
        %v288 = vld [vmem:[%s219 + $0x10] sm:$0xff]
        %v289 = vld [vmem:[%s219 + $0x18] sm:$0xff]
        %v290 = vld [vmem:[%s219 + $0x20] sm:$0xff]
        %v291 = vld [vmem:[%s219 + $0x28] sm:$0xff]
        %v292 = vld [vmem:[%s219 + $0x30] sm:$0xff]
        %v293 = vld [vmem:[%s219 + $0x38] sm:$0xff]
        %v294 = vsel %vm264, 1, 0
        %vm295 = vcmp.eq.s32.totalorder %v294, 1
        %v296 = vsel %vm295, %v282, %v286
        %v297 = vsel %vm295, %v283, %v287
        %v298 = vsel %vm295, %v284, %v288
        %v299 = vsel %vm295, %v285, %v289
        %v300 = vsel %vm295, %v282, %v290
        %v301 = vsel %vm295, %v283, %v291
        %v302 = vsel %vm295, %v284, %v292
        %v303 = vsel %vm295, %v285, %v293
        %vm304 = vcmask 64512
        %305 = vst.msk [vmem:[%s259] sm:$0xff] %vm304, %v296
        %306 = vst.msk [vmem:[%s259 + $0x8] sm:$0xff] %vm304, %v297
        %307 = vst.msk [vmem:[%s259 + $0x10] sm:$0xff] %vm304, %v298
        %308 = vst.msk [vmem:[%s259 + $0x18] sm:$0xff] %vm304, %v299
        %309 = vst.msk [vmem:[%s259 + $0x20] sm:$0xff] %vm304, %v300
        %310 = vst.msk [vmem:[%s259 + $0x28] sm:$0xff] %vm304, %v301
        %311 = vst.msk [vmem:[%s259 + $0x30] sm:$0xff] %vm304, %v302
        %312 = vst.msk [vmem:[%s259 + $0x38] sm:$0xff] %vm304, %v303
        %s313 = scalar_lea.vmem %s228, 32 [#allocation5]
        %v314 = vld [vmem:[%s313] sm:$0xff]
        %v315 = vld [vmem:[%s313 + $0x8] sm:$0xff]
        %v316 = vld [vmem:[%s313 + $0x10] sm:$0xff]
        %v317 = vld [vmem:[%s313 + $0x18] sm:$0xff]
        %v318 = vld [vmem:[%s219] sm:$0xff]
        %v319 = vld [vmem:[%s219 + $0x8] sm:$0xff]
        %v320 = vld [vmem:[%s219 + $0x10] sm:$0xff]
        %v321 = vld [vmem:[%s219 + $0x18] sm:$0xff]
        %v322 = vld [vmem:[%s219 + $0x20] sm:$0xff]
        %v323 = vld [vmem:[%s219 + $0x28] sm:$0xff]
        %v324 = vld [vmem:[%s219 + $0x30] sm:$0xff]
        %v325 = vld [vmem:[%s219 + $0x38] sm:$0xff]
        %334 = vrot.lane.b32.xlu0 %v318, 120
        %v335 = vpop.permute.xlu0 %334
        %336 = vrot.lane.b32.xlu0 %v319, 120
        %v337 = vpop.permute.xlu0 %336
        %338 = vrot.lane.b32.xlu0 %v320, 120
        %v339 = vpop.permute.xlu0 %338
        %340 = vrot.lane.b32.xlu0 %v321, 120
        %v341 = vpop.permute.xlu0 %340
        %342 = vrot.lane.b32.xlu0 %v322, 120
        %v343 = vpop.permute.xlu0 %342
        %344 = vrot.lane.b32.xlu0 %v323, 120
        %v345 = vpop.permute.xlu0 %344
        %346 = vrot.lane.b32.xlu0 %v324, 120
        %v347 = vpop.permute.xlu0 %346
        %348 = vrot.lane.b32.xlu0 %v325, 120
        %v349 = vpop.permute.xlu0 %348
        %v358 = vsel %vm295, %v314, %v335
        %v359 = vsel %vm295, %v315, %v337
        %v360 = vsel %vm295, %v316, %v339
        %v361 = vsel %vm295, %v317, %v341
        %v362 = vsel %vm295, %v314, %v343
        %v363 = vsel %vm295, %v315, %v345
        %v364 = vsel %vm295, %v316, %v347
        %v365 = vsel %vm295, %v317, %v349
        %374 = vrot.lane.b32.xlu0 %v358, 8
        %v375 = vpop.permute.xlu0 %374
        %376 = vrot.lane.b32.xlu0 %v359, 8
        %v377 = vpop.permute.xlu0 %376
        %378 = vrot.lane.b32.xlu0 %v360, 8
        %v379 = vpop.permute.xlu0 %378
        %380 = vrot.lane.b32.xlu0 %v361, 8
        %v381 = vpop.permute.xlu0 %380
        %382 = vrot.lane.b32.xlu0 %v362, 8
        %v383 = vpop.permute.xlu0 %382
        %384 = vrot.lane.b32.xlu0 %v363, 8
        %v385 = vpop.permute.xlu0 %384
        %386 = vrot.lane.b32.xlu0 %v364, 8
        %v387 = vpop.permute.xlu0 %386
        %388 = vrot.lane.b32.xlu0 %v365, 8
        %v389 = vpop.permute.xlu0 %388
        %vm398 = vcmask 130112
        %399 = vst.msk [vmem:[%s259] sm:$0xff] %vm398, %v375
        %400 = vst.msk [vmem:[%s259 + $0x8] sm:$0xff] %vm398, %v377
        %401 = vst.msk [vmem:[%s259 + $0x10] sm:$0xff] %vm398, %v379
        %402 = vst.msk [vmem:[%s259 + $0x18] sm:$0xff] %vm398, %v381
        %403 = vst.msk [vmem:[%s259 + $0x20] sm:$0xff] %vm398, %v383
        %404 = vst.msk [vmem:[%s259 + $0x28] sm:$0xff] %vm398, %v385
        %405 = vst.msk [vmem:[%s259 + $0x30] sm:$0xff] %vm398, %v387
        %406 = vst.msk [vmem:[%s259 + $0x38] sm:$0xff] %vm398, %v389
        %s407 = sand.u32 %s120, 1
        %s408 = scalar_lea.sflag [#allocation4], %s407
        %s409 = sand.u32 %s120, 1
        %s410 = smul.addr %s409, 64
        %s411 = scalar_lea.vmem [#allocation8], %s410
        // Predicated region
        $region45: #{generate_image.1} parent=31 // pred_check
          %p412 = pneg %p130
        $region46: #{generate_image.1} parent=31 // pred_check_branch
          %414 = sbr.rel (%p412) target = $region48
        $region47: #{generate_image.1} parent=31 // pred_region
          %s415 = smul.u32 2, %s27
          %s417 = ssub.s32 1024, 1024
          %418 = vsyncadd %s408, %s417
          %s419 = smul.addr %s415, 8
          %s420 = sadd.s32 %s28, %s419
          %s421 = smul.addr %s420, 128
          %s422 = scalar_lea.hbm %s3, %s421
          %s423 = sshll.u32 %s411, 4
          %s424 = int_to_ptr.vmem [resolvable:$true] %s423
          %429 = dma.vmem_to_hbm [thread:$0]  %s424, 1024, %s422, %s408, 128, 256, 8
        $region48: #{generate_image.1} parent=31 // pred_fallthru
          _
      $region32: #{generate_image.1} parent=5 // pred_fallthru
        _
      %p430 = scmp.le.s32.totalorder 2, %s18
      // Predicated region
      $region49: #{generate_image.1} parent=5 // pred_check
        %p431 = pneg %p430
      $region50: #{generate_image.1} parent=5 // pred_check_branch
        %433 = sbr.rel (%p431) target = $region52
      $region51: #{generate_image.1} parent=5 // pred_region
        %s434 = ssub.s32 %s18, 2
        // Predicated region
        $region53: #{generate_image.1} parent=51 // pred_check
          %p435 = pneg %p136
        $region54: #{generate_image.1} parent=51 // pred_check_branch
          %437 = sbr.rel (%p435) target = $region56
        $region55: #{generate_image.1} parent=51 // pred_region
          %s438 = sand.u32 %s121, 1
          %s439 = scalar_lea.sflag [#allocation4], %s438
          %s440 = sand.u32 %s121, 1
          %s441 = smul.addr %s440, 64
          %s442 = scalar_lea.vmem [#allocation8], %s441
          %443 = dma.done %s439, 1024
        $region56: #{generate_image.1} parent=51 // pred_fallthru
          _
      $region52: #{generate_image.1} parent=5 // pred_fallthru
        _
    $region6: #{generate_image.1} parent=1 // loop_footer
      %s22 = sadd.s32 1, %s18
    $region7: #{generate_image.1} parent=1 // loop_footer_branch
      %17 = sbr.rel target = $region3
    $region8: #{generate_image.1} parent=1 // loop_exit
      _
    %444 = vsyncpa [#allocation3], 1
    %s445 = scalar_lea.sflag [#allocation3], 1
    %446 = vsyncpa %s445, 1
    %447 = vsyncpa [#allocation6], 1
    %s448 = scalar_lea.sflag [#allocation6], 1
    %449 = vsyncpa %s448, 1
    %450 = vsyncpa [#allocation4], 1
    %s451 = scalar_lea.sflag [#allocation4], 1
    %452 = vsyncpa %s451, 1

</llo_original>
